<compile_context>
chip_gen: v5e
topology: v5e:2x2
jax: 0.10.0
libtpu: 0.0.40
codegen_flags: <defaults>
</compile_context>

<pallas_src>
import math
import functools

import jax
import jax.numpy as jnp
from jax.experimental import pallas as pl
from jax.experimental.pallas import tpu as pltpu

ALPHA = 0.1       # TauRLayer alpha
BETA = 0.1        # TauRLayer beta
EPSILON = 1e-6    # TauRLayer epsilon
MIN_DENOM = 1e-5  # TauRLayer min denominator
LN_EPS = 1e-5     # nn.LayerNorm default eps

LANE = 128
MAX_TILE_B = 8192            # per-tile batch cap: fits scoped VMEM on all gens
_INPUTS_PER_BLOCK = 3        # w1, wpr (=[wp;wr]), vec (=b1|gamma|beta|bp|br)


def _round_up(v, m):
    return -(-v // m) * m


# ---------------------------------------------------------------------------
# Fused kernel: all hidden blocks + output projection, feature-major layout.
# Activations are (features, tile_b): batch on the lane axis (lane-dense),
# features (<= 2H = 64) on the sublane axis.
# ---------------------------------------------------------------------------
def _fused_network_kernel(n_blocks, *refs):
    """refs = (x_ref, <3 refs per block>..., w_out_ref, b_out_ref, o_ref)."""
    x_ref = refs[0]
    o_ref = refs[-1]
    w_refs = refs[1:-1]

    h = x_ref[...]                                   # (C0, tile_b)
    idx = 0
    for _ in range(n_blocks):
        w1 = w_refs[idx][...]                        # (H, C_prev)
        wpr = w_refs[idx + 1][...]                   # (2H, H) = [Wp; Wr]
        vec = w_refs[idx + 2][...]                   # (H, 5)
        idx += _INPUTS_PER_BLOCK
        hd = w1.shape[0]
        b1, gamma, beta = vec[:, 0:1], vec[:, 1:2], vec[:, 2:3]
        bp, br = vec[:, 3:4], vec[:, 4:5]

        # Linear: W1 @ h -> (H, tile_b)
        z = jnp.dot(w1, h, preferred_element_type=jnp.float32) + b1

        # LayerNorm over the feature (sublane) axis, biased variance (PyTorch)
        mean = jnp.mean(z, axis=0, keepdims=True)
        var = jnp.mean((z - mean) ** 2, axis=0, keepdims=True)
        z = (z - mean) * jax.lax.rsqrt(var + LN_EPS)
        z = z * gamma + beta

        # ReLU
        z = jnp.maximum(z, 0.0)

        # TauRLayer: one fused MXU push against [Wp; Wr]; free sublane slices.
        pr = jnp.dot(wpr, z, preferred_element_type=jnp.float32)  # (2H, tile_b)
        progress = jnp.tanh(pr[:hd, :] + bp)
        risk = jnp.maximum(pr[hd:, :] + br, 0.0)
        numerator = progress + ALPHA
        denominator = jnp.maximum(risk + BETA + EPSILON, MIN_DENOM)
        # approx=True (EUP vrcp) is faster but perturbs numerics beyond 1e-4.
        h = jnp.tanh(numerator * pl.reciprocal(denominator, approx=False))
        # (clip(-10, 10) after tanh is mathematically dead -> removed)

    # Output projection: W_out @ h + b_out -> (out_dim, tile_b), lane-dense.
    w_out = w_refs[idx][...]
    b_out = w_refs[idx + 1][...]
    o_ref[...] = jnp.dot(w_out, h, preferred_element_type=jnp.float32) + b_out


# ---------------------------------------------------------------------------
# Wrapper: one pallas_call for the whole network, batch-tiled 1-D grid.
# ---------------------------------------------------------------------------
def _const_spec(shape):
    # Full-array block, constant index -> stays resident across grid steps;
    # single-buffered since the block index never changes.
    return pl.BlockSpec(tuple(shape), lambda i: (0, 0),
                        pipeline_mode=pl.Buffered(1))


def integrated_evolving_network_forward(x, params, tile_b=None):
    B, in_dim = x.shape
    n_blocks = len(params["blocks"])
    out_dim = params["w_out"].shape[0]
    hidden = [blk["w1"].shape[0] for blk in params["blocks"]]
    max_h = max(hidden) if hidden else in_dim

    # ---- batch tile: adaptive, lane-dense, >= 2 tiles when the batch is big
    if tile_b is None:
        if B <= 2 * LANE:
            tile_b = _round_up(B, 8)          # single tile == full padded array
        else:
            n_tiles = max(2, pl.cdiv(B, MAX_TILE_B))
            tile_b = min(_round_up(pl.cdiv(B, n_tiles), LANE), MAX_TILE_B)

    pad = (-B) % tile_b
    # Feature-major: transpose once here so batch rides the lane axis.
    xt = x.T
    if pad:
        xt = jnp.pad(xt, ((0, 0), (0, pad)))                       # (in_dim, Bp)
    bp_total = xt.shape[1]
    grid = (bp_total // tile_b,)

    # ---- pack weights: 3 inputs per block + output projection ----
    weights = []
    in_specs = [pl.BlockSpec((in_dim, tile_b), lambda i: (0, i))]
    for blk in params["blocks"]:
        wpr = jnp.concatenate([blk["wp"], blk["wr"]], axis=0)       # (2H, H)
        vec = jnp.stack([blk["b1"], blk["gamma"], blk["beta"],
                         blk["bp"], blk["br"]], axis=1)             # (H, 5)
        for w in (blk["w1"], wpr, vec):
            weights.append(w)
            in_specs.append(_const_spec(w.shape))
    b_out = params["b_out"].reshape(out_dim, 1)
    for w in (params["w_out"], b_out):
        weights.append(w)
        in_specs.append(_const_spec(w.shape))

    # ---- VMEM budget: double-buffered I/O + live intermediates + weights ----
    weight_bytes = sum(int(w.size) * 4 for w in weights)
    act_bytes = 4 * tile_b * (2 * (in_dim + out_dim) + 10 * max_h)
    vmem_limit = int(min(max(act_bytes + 2 * weight_bytes + (4 << 20), 16 << 20),
                         64 << 20))

    out_t = pl.pallas_call(
        functools.partial(_fused_network_kernel, n_blocks),
        out_shape=jax.ShapeDtypeStruct((out_dim, bp_total), jnp.float32),
        grid=grid,
        in_specs=in_specs,
        out_specs=pl.BlockSpec((out_dim, tile_b), lambda i: (0, i)),
        compiler_params=pltpu.CompilerParams(
            dimension_semantics=("parallel",),
            vmem_limit_bytes=vmem_limit),
    )(xt, *weights)

    return out_t[:, :B].T                                           # (B, out_dim)


# ---------------------------------------------------------------------------
# Deterministic parameter construction (PyTorch (out, in) weight layout)
# ---------------------------------------------------------------------------
def _xavier_uniform(key, out_f, in_f, gain=1.0):
    limit = gain * math.sqrt(6.0 / (in_f + out_f))
    return jax.random.uniform(key, (out_f, in_f), jnp.float32, -limit, limit)


def init_params(key, input_dim, hidden_dims, output_dim):
    params = {"blocks": []}
    cur = input_dim
    for h in hidden_dims:
        key, k1, k2, k3 = jax.random.split(key, 4)
        params["blocks"].append({
            # nn.Linear(cur, h)
            "w1": _xavier_uniform(k1, h, cur),
            "b1": jnp.zeros((h,), jnp.float32),
            # nn.LayerNorm(h)
            "gamma": jnp.ones((h,), jnp.float32),
            "beta": jnp.zeros((h,), jnp.float32),
            # TauRLayer(h, h): xavier_uniform with gain=0.1, zero biases
            "wp": _xavier_uniform(k2, h, h, gain=0.1),
            "bp": jnp.zeros((h,), jnp.float32),
            "wr": _xavier_uniform(k3, h, h, gain=0.1),
            "br": jnp.zeros((h,), jnp.float32),
        })
        cur = h
    key, ko = jax.random.split(key)
    params["w_out"] = _xavier_uniform(ko, output_dim, cur)
    params["b_out"] = jnp.zeros((output_dim,), jnp.float32)
    return params


# Pure-JAX reference for a correctness sanity check
def _reference_forward(x, params):
    cur = x
    for p in params["blocks"]:
        h = cur @ p["w1"].T + p["b1"]
        mean = jnp.mean(h, axis=-1, keepdims=True)
        var = jnp.mean((h - mean) ** 2, axis=-1, keepdims=True)
        h = (h - mean) / jnp.sqrt(var + LN_EPS) * p["gamma"] + p["beta"]
        h = jnp.maximum(h, 0.0)
        prog = jnp.tanh(h @ p["wp"].T + p["bp"])
        risk = jnp.maximum(h @ p["wr"].T + p["br"], 0.0)
        tau = jnp.tanh((prog + ALPHA) /
                       jnp.maximum(risk + BETA + EPSILON, MIN_DENOM))
        cur = jnp.clip(tau, -10.0, 10.0)   # no-op after tanh; kept for fidelity
    return cur @ params["w_out"].T + params["b_out"]


if __name__ == "__main__":
    BATCH, INPUT_DIM, HIDDEN_DIMS, OUTPUT_DIM = 8, 16, (32, 32), 8

    key = jax.random.PRNGKey(0)
    key, kx = jax.random.split(key)
    x = jax.random.normal(kx, (BATCH, INPUT_DIM), jnp.float32)

    params = init_params(key, INPUT_DIM, HIDDEN_DIMS, OUTPUT_DIM)

    out = integrated_evolving_network_forward(x, params)
    out = jax.block_until_ready(out)

    ref = _reference_forward(x, params)
    assert out.shape == (BATCH, OUTPUT_DIM)
    assert jnp.allclose(out, ref, atol=1e-4, rtol=1e-4), "mismatch vs reference"

    print("KERNEL_OK")
</pallas_src>

<mosaic_0001>
module attributes {stable_mosaic.version = 11 : i64} {
  func.func @_fused_network_kernel(%arg0: i32, %arg1: memref<16x8xf32, #tpu.memory_space<vmem>>, %arg2: memref<32x16xf32, #tpu.memory_space<vmem>>, %arg3: memref<64x32xf32, #tpu.memory_space<vmem>>, %arg4: memref<32x5xf32, #tpu.memory_space<vmem>>, %arg5: memref<32x32xf32, #tpu.memory_space<vmem>>, %arg6: memref<64x32xf32, #tpu.memory_space<vmem>>, %arg7: memref<32x5xf32, #tpu.memory_space<vmem>>, %arg8: memref<8x32xf32, #tpu.memory_space<vmem>>, %arg9: memref<8x1xf32, #tpu.memory_space<vmem>>, %arg10: memref<8x8xf32, #tpu.memory_space<vmem>>) attributes {dimension_semantics = [#tpu.dimension_semantics<parallel>], iteration_bounds = array<i64: 1>, scalar_prefetch = 0 : i64, scratch_operands = 0 : i64, tpu.core_type = #tpu.core_type<tc>, window_params = [{transform_indices = @transform_0, window_bounds = array<i64: 16, 8>}, {pipeline_mode = #tpu.pipeline_mode<synchronous>, transform_indices = @transform_1, window_bounds = array<i64: 32, 16>}, {pipeline_mode = #tpu.pipeline_mode<synchronous>, transform_indices = @transform_2, window_bounds = array<i64: 64, 32>}, {pipeline_mode = #tpu.pipeline_mode<synchronous>, transform_indices = @transform_3, window_bounds = array<i64: 32, 5>}, {pipeline_mode = #tpu.pipeline_mode<synchronous>, transform_indices = @transform_4, window_bounds = array<i64: 32, 32>}, {pipeline_mode = #tpu.pipeline_mode<synchronous>, transform_indices = @transform_5, window_bounds = array<i64: 64, 32>}, {pipeline_mode = #tpu.pipeline_mode<synchronous>, transform_indices = @transform_6, window_bounds = array<i64: 32, 5>}, {pipeline_mode = #tpu.pipeline_mode<synchronous>, transform_indices = @transform_7, window_bounds = array<i64: 8, 32>}, {pipeline_mode = #tpu.pipeline_mode<synchronous>, transform_indices = @transform_8, window_bounds = array<i64: 8, 1>}, {transform_indices = @transform_9, window_bounds = array<i64: 8, 8>}]} {
    %c0 = arith.constant 0 : index
    %c0_0 = arith.constant 0 : index
    %0 = vector.load %arg1[%c0, %c0_0] : memref<16x8xf32, #tpu.memory_space<vmem>>, vector<16x8xf32>
    %c0_1 = arith.constant 0 : index
    %c0_2 = arith.constant 0 : index
    %1 = vector.load %arg2[%c0_1, %c0_2] : memref<32x16xf32, #tpu.memory_space<vmem>>, vector<32x16xf32>
    %c0_3 = arith.constant 0 : index
    %c0_4 = arith.constant 0 : index
    %2 = vector.load %arg3[%c0_3, %c0_4] : memref<64x32xf32, #tpu.memory_space<vmem>>, vector<64x32xf32>
    %c0_5 = arith.constant 0 : index
    %c0_6 = arith.constant 0 : index
    %3 = vector.load %arg4[%c0_5, %c0_6] : memref<32x5xf32, #tpu.memory_space<vmem>>, vector<32x5xf32>
    %4 = vector.extract_strided_slice %3 {offsets = [0, 0], sizes = [32, 1], strides = [1, 1]} : vector<32x5xf32> to vector<32x1xf32>
    %5 = vector.extract_strided_slice %3 {offsets = [0, 1], sizes = [32, 1], strides = [1, 1]} : vector<32x5xf32> to vector<32x1xf32>
    %6 = vector.extract_strided_slice %3 {offsets = [0, 2], sizes = [32, 1], strides = [1, 1]} : vector<32x5xf32> to vector<32x1xf32>
    %7 = vector.extract_strided_slice %3 {offsets = [0, 3], sizes = [32, 1], strides = [1, 1]} : vector<32x5xf32> to vector<32x1xf32>
    %8 = vector.extract_strided_slice %3 {offsets = [0, 4], sizes = [32, 1], strides = [1, 1]} : vector<32x5xf32> to vector<32x1xf32>
    %cst = arith.constant dense<0.000000e+00> : vector<32x8xf32>
    %9 = tpu.matmul %1, %0, %cst {dimension_numbers = #tpu.dot_dimension_numbers<[1], [0], [0], [1], [0, 0, 1, 1], [], []>} : vector<32x16xf32>, vector<16x8xf32>, vector<32x8xf32> -> vector<32x8xf32>
    %10 = vector.broadcast %4 : vector<32x1xf32> to vector<32x8xf32>
    %11 = arith.addf %9, %10 : vector<32x8xf32>
    %cst_7 = arith.constant dense<0.000000e+00> : vector<8xf32>
    %12 = vector.multi_reduction <add>, %11, %cst_7 [0] : vector<32x8xf32> to vector<8xf32>
    %13 = vector.shape_cast %12 : vector<8xf32> to vector<1x8xf32>
    %cst_8 = arith.constant 3.200000e+01 : f32
    %14 = vector.broadcast %cst_8 : f32 to vector<1x8xf32>
    %15 = arith.divf %13, %14 : vector<1x8xf32>
    %16 = vector.broadcast %15 : vector<1x8xf32> to vector<32x8xf32>
    %17 = arith.subf %11, %16 : vector<32x8xf32>
    %18 = arith.mulf %17, %17 : vector<32x8xf32>
    %cst_9 = arith.constant dense<0.000000e+00> : vector<8xf32>
    %19 = vector.multi_reduction <add>, %18, %cst_9 [0] : vector<32x8xf32> to vector<8xf32>
    %20 = vector.shape_cast %19 : vector<8xf32> to vector<1x8xf32>
    %cst_10 = arith.constant 3.200000e+01 : f32
    %21 = vector.broadcast %cst_10 : f32 to vector<1x8xf32>
    %22 = arith.divf %20, %21 : vector<1x8xf32>
    %23 = vector.broadcast %15 : vector<1x8xf32> to vector<32x8xf32>
    %24 = arith.subf %11, %23 : vector<32x8xf32>
    %cst_11 = arith.constant 9.99999974E-6 : f32
    %25 = vector.broadcast %cst_11 : f32 to vector<1x8xf32>
    %26 = arith.addf %22, %25 : vector<1x8xf32>
    %27 = math.rsqrt %26 : vector<1x8xf32>
    %28 = vector.broadcast %27 : vector<1x8xf32> to vector<32x8xf32>
    %29 = arith.mulf %24, %28 : vector<32x8xf32>
    %30 = vector.broadcast %5 : vector<32x1xf32> to vector<32x8xf32>
    %31 = arith.mulf %29, %30 : vector<32x8xf32>
    %32 = vector.broadcast %6 : vector<32x1xf32> to vector<32x8xf32>
    %33 = arith.addf %31, %32 : vector<32x8xf32>
    %cst_12 = arith.constant 0.000000e+00 : f32
    %34 = vector.broadcast %cst_12 : f32 to vector<32x8xf32>
    %35 = arith.maximumf %33, %34 : vector<32x8xf32>
    %cst_13 = arith.constant dense<0.000000e+00> : vector<64x8xf32>
    %36 = tpu.matmul %2, %35, %cst_13 {dimension_numbers = #tpu.dot_dimension_numbers<[1], [0], [0], [1], [0, 0, 1, 1], [], []>} : vector<64x32xf32>, vector<32x8xf32>, vector<64x8xf32> -> vector<64x8xf32>
    %37 = vector.extract_strided_slice %36 {offsets = [0, 0], sizes = [32, 8], strides = [1, 1]} : vector<64x8xf32> to vector<32x8xf32>
    %38 = vector.broadcast %7 : vector<32x1xf32> to vector<32x8xf32>
    %39 = arith.addf %37, %38 : vector<32x8xf32>
    %40 = math.tanh %39 : vector<32x8xf32>
    %41 = vector.extract_strided_slice %36 {offsets = [32, 0], sizes = [32, 8], strides = [1, 1]} : vector<64x8xf32> to vector<32x8xf32>
    %42 = vector.broadcast %8 : vector<32x1xf32> to vector<32x8xf32>
    %43 = arith.addf %41, %42 : vector<32x8xf32>
    %cst_14 = arith.constant 0.000000e+00 : f32
    %44 = vector.broadcast %cst_14 : f32 to vector<32x8xf32>
    %45 = arith.maximumf %43, %44 : vector<32x8xf32>
    %cst_15 = arith.constant 1.000000e-01 : f32
    %46 = vector.broadcast %cst_15 : f32 to vector<32x8xf32>
    %47 = arith.addf %40, %46 : vector<32x8xf32>
    %cst_16 = arith.constant 1.000000e-01 : f32
    %48 = vector.broadcast %cst_16 : f32 to vector<32x8xf32>
    %49 = arith.addf %45, %48 : vector<32x8xf32>
    %cst_17 = arith.constant 9.99999997E-7 : f32
    %50 = vector.broadcast %cst_17 : f32 to vector<32x8xf32>
    %51 = arith.addf %49, %50 : vector<32x8xf32>
    %cst_18 = arith.constant 9.99999974E-6 : f32
    %52 = vector.broadcast %cst_18 : f32 to vector<32x8xf32>
    %53 = arith.maximumf %51, %52 : vector<32x8xf32>
    %54 = tpu.reciprocal %53 : vector<32x8xf32> -> vector<32x8xf32>
    %55 = arith.mulf %47, %54 : vector<32x8xf32>
    %56 = math.tanh %55 : vector<32x8xf32>
    %c0_19 = arith.constant 0 : index
    %c0_20 = arith.constant 0 : index
    %57 = vector.load %arg5[%c0_19, %c0_20] : memref<32x32xf32, #tpu.memory_space<vmem>>, vector<32x32xf32>
    %c0_21 = arith.constant 0 : index
    %c0_22 = arith.constant 0 : index
    %58 = vector.load %arg6[%c0_21, %c0_22] : memref<64x32xf32, #tpu.memory_space<vmem>>, vector<64x32xf32>
    %c0_23 = arith.constant 0 : index
    %c0_24 = arith.constant 0 : index
    %59 = vector.load %arg7[%c0_23, %c0_24] : memref<32x5xf32, #tpu.memory_space<vmem>>, vector<32x5xf32>
    %60 = vector.extract_strided_slice %59 {offsets = [0, 0], sizes = [32, 1], strides = [1, 1]} : vector<32x5xf32> to vector<32x1xf32>
    %61 = vector.extract_strided_slice %59 {offsets = [0, 1], sizes = [32, 1], strides = [1, 1]} : vector<32x5xf32> to vector<32x1xf32>
    %62 = vector.extract_strided_slice %59 {offsets = [0, 2], sizes = [32, 1], strides = [1, 1]} : vector<32x5xf32> to vector<32x1xf32>
    %63 = vector.extract_strided_slice %59 {offsets = [0, 3], sizes = [32, 1], strides = [1, 1]} : vector<32x5xf32> to vector<32x1xf32>
    %64 = vector.extract_strided_slice %59 {offsets = [0, 4], sizes = [32, 1], strides = [1, 1]} : vector<32x5xf32> to vector<32x1xf32>
    %cst_25 = arith.constant dense<0.000000e+00> : vector<32x8xf32>
    %65 = tpu.matmul %57, %56, %cst_25 {dimension_numbers = #tpu.dot_dimension_numbers<[1], [0], [0], [1], [0, 0, 1, 1], [], []>} : vector<32x32xf32>, vector<32x8xf32>, vector<32x8xf32> -> vector<32x8xf32>
    %66 = vector.broadcast %60 : vector<32x1xf32> to vector<32x8xf32>
    %67 = arith.addf %65, %66 : vector<32x8xf32>
    %cst_26 = arith.constant dense<0.000000e+00> : vector<8xf32>
    %68 = vector.multi_reduction <add>, %67, %cst_26 [0] : vector<32x8xf32> to vector<8xf32>
    %69 = vector.shape_cast %68 : vector<8xf32> to vector<1x8xf32>
    %cst_27 = arith.constant 3.200000e+01 : f32
    %70 = vector.broadcast %cst_27 : f32 to vector<1x8xf32>
    %71 = arith.divf %69, %70 : vector<1x8xf32>
    %72 = vector.broadcast %71 : vector<1x8xf32> to vector<32x8xf32>
    %73 = arith.subf %67, %72 : vector<32x8xf32>
    %74 = arith.mulf %73, %73 : vector<32x8xf32>
    %cst_28 = arith.constant dense<0.000000e+00> : vector<8xf32>
    %75 = vector.multi_reduction <add>, %74, %cst_28 [0] : vector<32x8xf32> to vector<8xf32>
    %76 = vector.shape_cast %75 : vector<8xf32> to vector<1x8xf32>
    %cst_29 = arith.constant 3.200000e+01 : f32
    %77 = vector.broadcast %cst_29 : f32 to vector<1x8xf32>
    %78 = arith.divf %76, %77 : vector<1x8xf32>
    %79 = vector.broadcast %71 : vector<1x8xf32> to vector<32x8xf32>
    %80 = arith.subf %67, %79 : vector<32x8xf32>
    %cst_30 = arith.constant 9.99999974E-6 : f32
    %81 = vector.broadcast %cst_30 : f32 to vector<1x8xf32>
    %82 = arith.addf %78, %81 : vector<1x8xf32>
    %83 = math.rsqrt %82 : vector<1x8xf32>
    %84 = vector.broadcast %83 : vector<1x8xf32> to vector<32x8xf32>
    %85 = arith.mulf %80, %84 : vector<32x8xf32>
    %86 = vector.broadcast %61 : vector<32x1xf32> to vector<32x8xf32>
    %87 = arith.mulf %85, %86 : vector<32x8xf32>
    %88 = vector.broadcast %62 : vector<32x1xf32> to vector<32x8xf32>
    %89 = arith.addf %87, %88 : vector<32x8xf32>
    %cst_31 = arith.constant 0.000000e+00 : f32
    %90 = vector.broadcast %cst_31 : f32 to vector<32x8xf32>
    %91 = arith.maximumf %89, %90 : vector<32x8xf32>
    %cst_32 = arith.constant dense<0.000000e+00> : vector<64x8xf32>
    %92 = tpu.matmul %58, %91, %cst_32 {dimension_numbers = #tpu.dot_dimension_numbers<[1], [0], [0], [1], [0, 0, 1, 1], [], []>} : vector<64x32xf32>, vector<32x8xf32>, vector<64x8xf32> -> vector<64x8xf32>
    %93 = vector.extract_strided_slice %92 {offsets = [0, 0], sizes = [32, 8], strides = [1, 1]} : vector<64x8xf32> to vector<32x8xf32>
    %94 = vector.broadcast %63 : vector<32x1xf32> to vector<32x8xf32>
    %95 = arith.addf %93, %94 : vector<32x8xf32>
    %96 = math.tanh %95 : vector<32x8xf32>
    %97 = vector.extract_strided_slice %92 {offsets = [32, 0], sizes = [32, 8], strides = [1, 1]} : vector<64x8xf32> to vector<32x8xf32>
    %98 = vector.broadcast %64 : vector<32x1xf32> to vector<32x8xf32>
    %99 = arith.addf %97, %98 : vector<32x8xf32>
    %cst_33 = arith.constant 0.000000e+00 : f32
    %100 = vector.broadcast %cst_33 : f32 to vector<32x8xf32>
    %101 = arith.maximumf %99, %100 : vector<32x8xf32>
    %cst_34 = arith.constant 1.000000e-01 : f32
    %102 = vector.broadcast %cst_34 : f32 to vector<32x8xf32>
    %103 = arith.addf %96, %102 : vector<32x8xf32>
    %cst_35 = arith.constant 1.000000e-01 : f32
    %104 = vector.broadcast %cst_35 : f32 to vector<32x8xf32>
    %105 = arith.addf %101, %104 : vector<32x8xf32>
    %cst_36 = arith.constant 9.99999997E-7 : f32
    %106 = vector.broadcast %cst_36 : f32 to vector<32x8xf32>
    %107 = arith.addf %105, %106 : vector<32x8xf32>
    %cst_37 = arith.constant 9.99999974E-6 : f32
    %108 = vector.broadcast %cst_37 : f32 to vector<32x8xf32>
    %109 = arith.maximumf %107, %108 : vector<32x8xf32>
    %110 = tpu.reciprocal %109 : vector<32x8xf32> -> vector<32x8xf32>
    %111 = arith.mulf %103, %110 : vector<32x8xf32>
    %112 = math.tanh %111 : vector<32x8xf32>
    %c0_38 = arith.constant 0 : index
    %c0_39 = arith.constant 0 : index
    %113 = vector.load %arg8[%c0_38, %c0_39] : memref<8x32xf32, #tpu.memory_space<vmem>>, vector<8x32xf32>
    %c0_40 = arith.constant 0 : index
    %c0_41 = arith.constant 0 : index
    %114 = vector.load %arg9[%c0_40, %c0_41] : memref<8x1xf32, #tpu.memory_space<vmem>>, vector<8x1xf32>
    %cst_42 = arith.constant dense<0.000000e+00> : vector<8x8xf32>
    %115 = tpu.matmul %113, %112, %cst_42 {dimension_numbers = #tpu.dot_dimension_numbers<[1], [0], [0], [1], [0, 0, 1, 1], [], []>} : vector<8x32xf32>, vector<32x8xf32>, vector<8x8xf32> -> vector<8x8xf32>
    %116 = vector.broadcast %114 : vector<8x1xf32> to vector<8x8xf32>
    %117 = arith.addf %115, %116 : vector<8x8xf32>
    %c0_43 = arith.constant 0 : index
    %c0_44 = arith.constant 0 : index
    %118 = vector.load %arg10[%c0_43, %c0_44] : memref<8x8xf32, #tpu.memory_space<vmem>>, vector<8x8xf32>
    tpu.vector_store %arg10[%c0_43, %c0_44], %117 {strides = array<i32>} : memref<8x8xf32, #tpu.memory_space<vmem>>, vector<8x8xf32>,
    return
  }
  func.func @transform_0(%arg0: i32) -> (i32, i32) {
    %c0_i32 = arith.constant 0 : i32
    %c0_i32_0 = arith.constant 0 : i32
    return %c0_i32, %arg0 : i32, i32
  }
  func.func @transform_1(%arg0: i32) -> (i32, i32) {
    %c0_i32 = arith.constant 0 : i32
    %c0_i32_0 = arith.constant 0 : i32
    %c0_i32_1 = arith.constant 0 : i32
    return %c0_i32, %c0_i32_0 : i32, i32
  }
  func.func @transform_2(%arg0: i32) -> (i32, i32) {
    %c0_i32 = arith.constant 0 : i32
    %c0_i32_0 = arith.constant 0 : i32
    %c0_i32_1 = arith.constant 0 : i32
    return %c0_i32, %c0_i32_0 : i32, i32
  }
  func.func @transform_3(%arg0: i32) -> (i32, i32) {
    %c0_i32 = arith.constant 0 : i32
    %c0_i32_0 = arith.constant 0 : i32
    %c0_i32_1 = arith.constant 0 : i32
    return %c0_i32, %c0_i32_0 : i32, i32
  }
  func.func @transform_4(%arg0: i32) -> (i32, i32) {
    %c0_i32 = arith.constant 0 : i32
    %c0_i32_0 = arith.constant 0 : i32
    %c0_i32_1 = arith.constant 0 : i32
    return %c0_i32, %c0_i32_0 : i32, i32
  }
  func.func @transform_5(%arg0: i32) -> (i32, i32) {
    %c0_i32 = arith.constant 0 : i32
    %c0_i32_0 = arith.constant 0 : i32
    %c0_i32_1 = arith.constant 0 : i32
    return %c0_i32, %c0_i32_0 : i32, i32
  }
  func.func @transform_6(%arg0: i32) -> (i32, i32) {
    %c0_i32 = arith.constant 0 : i32
    %c0_i32_0 = arith.constant 0 : i32
    %c0_i32_1 = arith.constant 0 : i32
    return %c0_i32, %c0_i32_0 : i32, i32
  }
  func.func @transform_7(%arg0: i32) -> (i32, i32) {
    %c0_i32 = arith.constant 0 : i32
    %c0_i32_0 = arith.constant 0 : i32
    %c0_i32_1 = arith.constant 0 : i32
    return %c0_i32, %c0_i32_0 : i32, i32
  }
  func.func @transform_8(%arg0: i32) -> (i32, i32) {
    %c0_i32 = arith.constant 0 : i32
    %c0_i32_0 = arith.constant 0 : i32
    %c0_i32_1 = arith.constant 0 : i32
    return %c0_i32, %c0_i32_0 : i32, i32
  }
  func.func @transform_9(%arg0: i32) -> (i32, i32) {
    %c0_i32 = arith.constant 0 : i32
    %c0_i32_0 = arith.constant 0 : i32
    return %c0_i32, %arg0 : i32, i32
  }
}

</mosaic_0001>

<llo_original>
// kernel: tpu_custom_call.1
$region0: #{tpu_custom_call.1}
  #allocation0 [shape = 'u32[]', space=smem, size = 0x4, offset = 0x4, fixed_abs, tag = 'smem constant byte address 0x4 - core index']
  #allocation1 [shape = 'u32[72,128]{1,0:T(1,128)}', space=vmem, size = 0x9000, scoped, tag = 'internal scratch']
  %s0 = inlined_call_operand.vmem [shape: f32[16,8], index: 0, kind: input, shape index: {}]
  %s1 = inlined_call_operand.vmem [shape: f32[32,16], index: 1, kind: input, shape index: {}]
  %s2 = inlined_call_operand.vmem [shape: f32[64,32], index: 2, kind: input, shape index: {}]
  %s3 = inlined_call_operand.vmem [shape: f32[32,5], index: 3, kind: input, shape index: {}]
  %s4 = inlined_call_operand.vmem [shape: f32[32,32], index: 4, kind: input, shape index: {}]
  %s5 = inlined_call_operand.vmem [shape: f32[64,32], index: 5, kind: input, shape index: {}]
  %s6 = inlined_call_operand.vmem [shape: f32[32,5], index: 6, kind: input, shape index: {}]
  %s7 = inlined_call_operand.vmem [shape: f32[8,32], index: 7, kind: input, shape index: {}]
  %s8 = inlined_call_operand.vmem [shape: f32[8,1], index: 8, kind: input, shape index: {}]
  %s9 = inlined_call_operand.hbm [shape: f32[8,8], index: 9, kind: output, shape index: {}]
  %s10 = sld [smem:[#allocation0]]
  $region46: #{tpu_custom_call.1} parent=0
    _
  %s12 = ssub.s32 1, %s10
  %s13 = scalar_select 0, %s12, %s10
  $region1: #{tpu_custom_call.1} parent=0
    #allocation2 [shape = 'u8[4096]{0}', space=vmem, size = 0x1000, scoped, tag = 'output window, operand 0, single buffered']
    #allocation3 [shape = 's32[1]{0}', space=sflag, size = 0x4, scoped, tag = 'scoped memory for tpu_custom_call.1']
    %14 = vsyncpa [#allocation3], 0
    // Predicated region
    $region2: #{tpu_custom_call.1} parent=1 // pred_check
      _
    $region3: #{tpu_custom_call.1} parent=1 // pred_check_branch
      %16 = sbr.rel (0) target = $region5
    $region4: #{tpu_custom_call.1} parent=1 // pred_region
      _
    $region5: #{tpu_custom_call.1} parent=1 // pred_fallthru
      _
    // Predicated region
    $region6: #{tpu_custom_call.1} parent=1 // pred_check
      _
    $region7: #{tpu_custom_call.1} parent=1 // pred_check_branch
      %18 = sbr.rel (0) target = $region9
    $region8: #{tpu_custom_call.1} parent=1 // pred_region
      _
    $region9: #{tpu_custom_call.1} parent=1 // pred_fallthru
      _
    // Predicated region
    $region10: #{tpu_custom_call.1} parent=1 // pred_check
      _
    $region11: #{tpu_custom_call.1} parent=1 // pred_check_branch
      %20 = sbr.rel (0) target = $region13
    $region12: #{tpu_custom_call.1} parent=1 // pred_region
      _
    $region13: #{tpu_custom_call.1} parent=1 // pred_fallthru
      _
    // Predicated region
    $region14: #{tpu_custom_call.1} parent=1 // pred_check
      _
    $region15: #{tpu_custom_call.1} parent=1 // pred_check_branch
      %22 = sbr.rel (0) target = $region17
    $region16: #{tpu_custom_call.1} parent=1 // pred_region
      _
    $region17: #{tpu_custom_call.1} parent=1 // pred_fallthru
      _
    // Predicated region
    $region18: #{tpu_custom_call.1} parent=1 // pred_check
      _
    $region19: #{tpu_custom_call.1} parent=1 // pred_check_branch
      %24 = sbr.rel (0) target = $region21
    $region20: #{tpu_custom_call.1} parent=1 // pred_region
      _
    $region21: #{tpu_custom_call.1} parent=1 // pred_fallthru
      _
    // Predicated region
    $region22: #{tpu_custom_call.1} parent=1 // pred_check
      _
    $region23: #{tpu_custom_call.1} parent=1 // pred_check_branch
      %26 = sbr.rel (0) target = $region25
    $region24: #{tpu_custom_call.1} parent=1 // pred_region
      _
    $region25: #{tpu_custom_call.1} parent=1 // pred_fallthru
      _
    // Predicated region
    $region26: #{tpu_custom_call.1} parent=1 // pred_check
      _
    $region27: #{tpu_custom_call.1} parent=1 // pred_check_branch
      %28 = sbr.rel (0) target = $region29
    $region28: #{tpu_custom_call.1} parent=1 // pred_region
      _
    $region29: #{tpu_custom_call.1} parent=1 // pred_fallthru
      _
    // Predicated region
    $region30: #{tpu_custom_call.1} parent=1 // pred_check
      _
    $region31: #{tpu_custom_call.1} parent=1 // pred_check_branch
      %30 = sbr.rel (0) target = $region33
    $region32: #{tpu_custom_call.1} parent=1 // pred_region
      _
    $region33: #{tpu_custom_call.1} parent=1 // pred_fallthru
      _
    // Predicated region
    $region34: #{tpu_custom_call.1} parent=1 // pred_check
      _
    $region35: #{tpu_custom_call.1} parent=1 // pred_check_branch
      %32 = sbr.rel (0) target = $region37
    $region36: #{tpu_custom_call.1} parent=1 // pred_region
      _
    $region37: #{tpu_custom_call.1} parent=1 // pred_fallthru
      _
    %v33 = vld [vmem:[%s0] sm:$0xff]
    %v34 = vld [vmem:[%s0 + $0x8] sm:$0xff]
    %v35 = vld [vmem:[%s1] sm:$0xff]
    %v36 = vld [vmem:[%s1 + $0x8] sm:$0xff]
    %v37 = vld [vmem:[%s1 + $0x10] sm:$0xff]
    %v38 = vld [vmem:[%s1 + $0x18] sm:$0xff]
    %v39 = vld [vmem:[%s2] sm:$0xff]
    %v40 = vld [vmem:[%s2 + $0x8] sm:$0xff]
    %v41 = vld [vmem:[%s2 + $0x10] sm:$0xff]
    %v42 = vld [vmem:[%s2 + $0x18] sm:$0xff]
    %v43 = vld [vmem:[%s2 + $0x20] sm:$0xff]
    %v44 = vld [vmem:[%s2 + $0x28] sm:$0xff]
    %v45 = vld [vmem:[%s2 + $0x30] sm:$0xff]
    %v46 = vld [vmem:[%s2 + $0x38] sm:$0xff]
    %v47 = vld [vmem:[%s3] sm:$0xff]
    %v48 = vld [vmem:[%s3 + $0x8] sm:$0xff]
    %v49 = vld [vmem:[%s3 + $0x10] sm:$0xff]
    %v50 = vld [vmem:[%s3 + $0x18] sm:$0xff]
    %52 = vset.pattern.permute.xlu0 0
    %53 = vperm.xlu0 %52, %v47
    %v54 = vpop.permute.xlu0 %53
    %57 = vset.pattern.permute.xlu0 0
    %58 = vperm.xlu0 %57, %v48
    %v59 = vpop.permute.xlu0 %58
    %62 = vset.pattern.permute.xlu0 0
    %63 = vperm.xlu0 %62, %v49
    %v64 = vpop.permute.xlu0 %63
    %67 = vset.pattern.permute.xlu0 0
    %68 = vperm.xlu0 %67, %v50
    %v69 = vpop.permute.xlu0 %68
    %vm71 = vcmask 130048
    %v73 = vsel %vm71, %v35, 0
    %v76 = vsel %vm71, %v36, 0
    %v79 = vsel %vm71, %v37, 0
    %v82 = vsel %vm71, %v38, 0
    %84 = vmatpush.msra.mxu0 0.0
    %85 = vmatpush.msra.mxu0 0.0
    %86 = vmatpush.msra.mxu0 0.0
    %87 = vmatpush.msra.mxu0 0.0
    %88 = vmatpush.msra.mxu0 0.0
    %89 = vmatpush.msra.mxu0 0.0
    %90 = vmatpush.msra.mxu0 0.0
    %91 = vmatpush.msra.mxu0 0.0
    %92 = vmatpush.msra.mxu0 0.0
    %93 = vmatpush.msra.mxu0 0.0
    %94 = vmatpush.msra.mxu0 0.0
    %95 = vmatpush.msra.mxu0 0.0
    %96 = vmatpush.msra.mxu0 0.0
    %97 = vmatpush.msra.mxu0 0.0
    %98 = vmatpush.msra.mxu0 %v34
    %99 = vmatpush.msra.mxu0 %v33
    %100 = vmatmul.f32.gmra.mxu0 %v73
    %v101 = vpop.f32.mrf.mxu0
    %v102 = vadd.f32 %v54, %v101
    %103 = vmatmul.f32.gmra.mxu0 %v76
    %v104 = vpop.f32.mrf.mxu0
    %v105 = vadd.f32 %v59, %v104
    %106 = vmatmul.f32.gmra.mxu0 %v79
    %v107 = vpop.f32.mrf.mxu0
    %v108 = vadd.f32 %v64, %v107
    %109 = vmatmul.f32.gmra.mxu0 %v82
    %v110 = vpop.f32.mrf.mxu0
    %v111 = vadd.f32 %v69, %v110
    %112 = vdwg.mxu0
    %vm113 = vcmask 64512
    %v114 = vsel %vm113, %v102, 0.0
    %v115 = vsel %vm113, %v105, 0.0
    %v116 = vadd.f32 %v114, %v115
    %v117 = vsel %vm113, %v108, 0.0
    %v118 = vadd.f32 %v116, %v117
    %v119 = vsel %vm113, %v111, 0.0
    %v120 = vadd.f32 %v118, %v119
    %v121 = vrot.slane %v120, 4
    %v122 = vadd.f32 %v120, %v121
    %v123 = vrot.slane %v122, 2
    %v124 = vadd.f32 %v122, %v123
    %v125 = vrot.slane %v124, 1
    %v126 = vadd.f32 %v124, %v125
    %v127 = vrcp.pop 32.0
    %v128 = vmul.f32 32.0, %v127
    %v129 = vsub.f32 1.0, %v128
    %v130 = vmul.f32 %v127, %v129
    %v131 = vadd.f32 %v127, %v130
    %vm132 = vweird.f32 %v127
    %v133 = vsel %vm132, %v127, %v131
    %v134 = vmul.f32 %v126, %v133
    %v135 = vsub.f32 %v102, %v134
    %v136 = vsub.f32 %v105, %v134
    %v137 = vsub.f32 %v108, %v134
    %v138 = vsub.f32 %v111, %v134
    %v139 = vmul.f32 %v135, %v135
    %v140 = vmul.f32 %v136, %v136
    %v141 = vmul.f32 %v137, %v137
    %v142 = vmul.f32 %v138, %v138
    %v143 = vsel %vm113, %v139, 0.0
    %v144 = vsel %vm113, %v140, 0.0
    %v145 = vadd.f32 %v143, %v144
    %v146 = vsel %vm113, %v141, 0.0
    %v147 = vadd.f32 %v145, %v146
    %v148 = vsel %vm113, %v142, 0.0
    %v149 = vadd.f32 %v147, %v148
    %v150 = vrot.slane %v149, 4
    %v151 = vadd.f32 %v149, %v150
    %v152 = vrot.slane %v151, 2
    %v153 = vadd.f32 %v151, %v152
    %v154 = vrot.slane %v153, 1
    %v155 = vadd.f32 %v153, %v154
    %v156 = vmul.f32 %v155, %v133
    %v157 = vadd.f32 %v156, 1e-05
    %v158 = vrsqrt.pop %v157
    %v159 = vmul.f32 %v158, %v157
    %v160 = vmul.f32 %v159, %v158
    %v161 = vmul.f32 0.5, %v160
    %v162 = vsub.f32 1.5, %v161
    %v163 = vmul.f32 %v158, %v162
    %vm164 = vweird.f32 %v157
    %vm165 = vweird.f32 %v158
    %vm166 = vmor %vm164, %vm165
    %v167 = vsel %vm166, %v158, %v163
    %v168 = vmul.f32 %v135, %v167
    %v169 = vmul.f32 %v136, %v167
    %v170 = vmul.f32 %v137, %v167
    %v171 = vmul.f32 %v138, %v167
    %172 = vset.pattern.permute.xlu0 1
    %173 = vperm.xlu0 %172, %v47
    %v174 = vpop.permute.xlu0 %173
    %176 = vset.pattern.permute.xlu0 1
    %177 = vperm.xlu0 %176, %v48
    %v178 = vpop.permute.xlu0 %177
    %180 = vset.pattern.permute.xlu0 1
    %181 = vperm.xlu0 %180, %v49
    %v182 = vpop.permute.xlu0 %181
    %184 = vset.pattern.permute.xlu0 1
    %185 = vperm.xlu0 %184, %v50
    %v186 = vpop.permute.xlu0 %185
    %v188 = vmul.f32 %v168, %v174
    %v189 = vmul.f32 %v169, %v178
    %v190 = vmul.f32 %v170, %v182
    %v191 = vmul.f32 %v171, %v186
    %192 = vset.pattern.permute.xlu0 2
    %193 = vperm.xlu0 %192, %v47
    %v194 = vpop.permute.xlu0 %193
    %196 = vset.pattern.permute.xlu0 2
    %197 = vperm.xlu0 %196, %v48
    %v198 = vpop.permute.xlu0 %197
    %200 = vset.pattern.permute.xlu0 2
    %201 = vperm.xlu0 %200, %v49
    %v202 = vpop.permute.xlu0 %201
    %204 = vset.pattern.permute.xlu0 2
    %205 = vperm.xlu0 %204, %v50
    %v206 = vpop.permute.xlu0 %205
    %v208 = vadd.f32 %v188, %v194
    %v209 = vadd.f32 %v189, %v198
    %v210 = vadd.f32 %v190, %v202
    %v211 = vadd.f32 %v191, %v206
    %v212 = vmax.f32 %v208, 0.0
    %v213 = vmax.f32 %v209, 0.0
    %v214 = vmax.f32 %v210, 0.0
    %v215 = vmax.f32 %v211, 0.0
    %vm216 = vcmask 261120
    %v218 = vsel %vm216, %v39, 0
    %v221 = vsel %vm216, %v40, 0
    %v224 = vsel %vm216, %v41, 0
    %v227 = vsel %vm216, %v42, 0
    %v230 = vsel %vm216, %v43, 0
    %v233 = vsel %vm216, %v44, 0
    %v236 = vsel %vm216, %v45, 0
    %v239 = vsel %vm216, %v46, 0
    %241 = vmatpush.msra.mxu0 0.0
    %242 = vmatpush.msra.mxu0 0.0
    %243 = vmatpush.msra.mxu0 0.0
    %244 = vmatpush.msra.mxu0 0.0
    %245 = vmatpush.msra.mxu0 0.0
    %246 = vmatpush.msra.mxu0 0.0
    %247 = vmatpush.msra.mxu0 0.0
    %248 = vmatpush.msra.mxu0 0.0
    %249 = vmatpush.msra.mxu0 0.0
    %250 = vmatpush.msra.mxu0 0.0
    %251 = vmatpush.msra.mxu0 0.0
    %252 = vmatpush.msra.mxu0 0.0
    %253 = vmatpush.msra.mxu0 %v215
    %254 = vmatpush.msra.mxu0 %v214
    %255 = vmatpush.msra.mxu0 %v213
    %256 = vmatpush.msra.mxu0 %v212
    %257 = vmatmul.f32.gmra.mxu0 %v218
    %v258 = vpop.f32.mrf.mxu0
    %v259 = vadd.f32 0.0, %v258
    %260 = vmatmul.f32.gmra.mxu0 %v221
    %v261 = vpop.f32.mrf.mxu0
    %v262 = vadd.f32 0.0, %v261
    %263 = vmatmul.f32.gmra.mxu0 %v224
    %v264 = vpop.f32.mrf.mxu0
    %v265 = vadd.f32 0.0, %v264
    %266 = vmatmul.f32.gmra.mxu0 %v227
    %v267 = vpop.f32.mrf.mxu0
    %v268 = vadd.f32 0.0, %v267
    %269 = vmatmul.f32.gmra.mxu0 %v230
    %v270 = vpop.f32.mrf.mxu0
    %v271 = vadd.f32 0.0, %v270
    %272 = vmatmul.f32.gmra.mxu0 %v233
    %v273 = vpop.f32.mrf.mxu0
    %v274 = vadd.f32 0.0, %v273
    %275 = vmatmul.f32.gmra.mxu0 %v236
    %v276 = vpop.f32.mrf.mxu0
    %v277 = vadd.f32 0.0, %v276
    %278 = vmatmul.f32.gmra.mxu0 %v239
    %v279 = vpop.f32.mrf.mxu0
    %v280 = vadd.f32 0.0, %v279
    %281 = vdwg.mxu0
    %282 = vset.pattern.permute.xlu0 3
    %283 = vperm.xlu0 %282, %v47
    %v284 = vpop.permute.xlu0 %283
    %286 = vset.pattern.permute.xlu0 3
    %287 = vperm.xlu0 %286, %v48
    %v288 = vpop.permute.xlu0 %287
    %290 = vset.pattern.permute.xlu0 3
    %291 = vperm.xlu0 %290, %v49
    %v292 = vpop.permute.xlu0 %291
    %294 = vset.pattern.permute.xlu0 3
    %295 = vperm.xlu0 %294, %v50
    %v296 = vpop.permute.xlu0 %295
    %v298 = vadd.f32 %v259, %v284
    %v299 = vadd.f32 %v262, %v288
    %v300 = vadd.f32 %v265, %v292
    %v301 = vadd.f32 %v268, %v296
    %v302 = vtanh.pop %v298
    %v303 = vtanh.pop %v299
    %v304 = vtanh.pop %v300
    %v305 = vtanh.pop %v301
    %306 = vset.pattern.permute.xlu0 4
    %307 = vperm.xlu0 %306, %v47
    %v308 = vpop.permute.xlu0 %307
    %310 = vset.pattern.permute.xlu0 4
    %311 = vperm.xlu0 %310, %v48
    %v312 = vpop.permute.xlu0 %311
    %314 = vset.pattern.permute.xlu0 4
    %315 = vperm.xlu0 %314, %v49
    %v316 = vpop.permute.xlu0 %315
    %318 = vset.pattern.permute.xlu0 4
    %319 = vperm.xlu0 %318, %v50
    %v320 = vpop.permute.xlu0 %319
    %v322 = vadd.f32 %v271, %v308
    %v323 = vadd.f32 %v274, %v312
    %v324 = vadd.f32 %v277, %v316
    %v325 = vadd.f32 %v280, %v320
    %v326 = vmax.f32 %v322, 0.0
    %v327 = vmax.f32 %v323, 0.0
    %v328 = vmax.f32 %v324, 0.0
    %v329 = vmax.f32 %v325, 0.0
    %v330 = vadd.f32 %v302, 0.1
    %v331 = vadd.f32 %v303, 0.1
    %v332 = vadd.f32 %v304, 0.1
    %v333 = vadd.f32 %v305, 0.1
    %v334 = vadd.f32 %v326, 0.1
    %v335 = vadd.f32 %v327, 0.1
    %v336 = vadd.f32 %v328, 0.1
    %v337 = vadd.f32 %v329, 0.1
    %v338 = vadd.f32 %v334, 1e-06
    %v339 = vadd.f32 %v335, 1e-06
    %v340 = vadd.f32 %v336, 1e-06
    %v341 = vadd.f32 %v337, 1e-06
    %v342 = vmax.f32 %v338, 1e-05
    %v343 = vmax.f32 %v339, 1e-05
    %v344 = vmax.f32 %v340, 1e-05
    %v345 = vmax.f32 %v341, 1e-05
    %v346 = vrcp.pop %v342
    %v347 = vmul.f32 %v342, %v346
    %v348 = vsub.f32 1.0, %v347
    %v349 = vmul.f32 %v346, %v348
    %v350 = vadd.f32 %v346, %v349
    %vm351 = vweird.f32 %v342
    %vm352 = vweird.f32 %v346
    %vm353 = vmor %vm351, %vm352
    %v354 = vsel %vm353, %v346, %v350
    %v355 = vand.u32 2147483647, %v342
    %vm356 = vcmp.eq.f32.partialorder %v355, 8.507059e+37
    %v357 = vand.u32 %v342, 2147483648
    %v358 = vor.u32 1.1754944e-38, %v357
    %v359 = vsel %vm356, %v358, %v354
    %v360 = vrcp.pop %v343
    %v361 = vmul.f32 %v343, %v360
    %v362 = vsub.f32 1.0, %v361
    %v363 = vmul.f32 %v360, %v362
    %v364 = vadd.f32 %v360, %v363
    %vm365 = vweird.f32 %v343
    %vm366 = vweird.f32 %v360
    %vm367 = vmor %vm365, %vm366
    %v368 = vsel %vm367, %v360, %v364
    %v369 = vand.u32 2147483647, %v343
    %vm370 = vcmp.eq.f32.partialorder %v369, 8.507059e+37
    %v371 = vand.u32 %v343, 2147483648
    %v372 = vor.u32 1.1754944e-38, %v371
    %v373 = vsel %vm370, %v372, %v368
    %v374 = vrcp.pop %v344
    %v375 = vmul.f32 %v344, %v374
    %v376 = vsub.f32 1.0, %v375
    %v377 = vmul.f32 %v374, %v376
    %v378 = vadd.f32 %v374, %v377
    %vm379 = vweird.f32 %v344
    %vm380 = vweird.f32 %v374
    %vm381 = vmor %vm379, %vm380
    %v382 = vsel %vm381, %v374, %v378
    %v383 = vand.u32 2147483647, %v344
    %vm384 = vcmp.eq.f32.partialorder %v383, 8.507059e+37
    %v385 = vand.u32 %v344, 2147483648
    %v386 = vor.u32 1.1754944e-38, %v385
    %v387 = vsel %vm384, %v386, %v382
    %v388 = vrcp.pop %v345
    %v389 = vmul.f32 %v345, %v388
    %v390 = vsub.f32 1.0, %v389
    %v391 = vmul.f32 %v388, %v390
    %v392 = vadd.f32 %v388, %v391
    %vm393 = vweird.f32 %v345
    %vm394 = vweird.f32 %v388
    %vm395 = vmor %vm393, %vm394
    %v396 = vsel %vm395, %v388, %v392
    %v397 = vand.u32 2147483647, %v345
    %vm398 = vcmp.eq.f32.partialorder %v397, 8.507059e+37
    %v399 = vand.u32 %v345, 2147483648
    %v400 = vor.u32 1.1754944e-38, %v399
    %v401 = vsel %vm398, %v400, %v396
    %v402 = vmul.f32 %v330, %v359
    %v403 = vmul.f32 %v331, %v373
    %v404 = vmul.f32 %v332, %v387
    %v405 = vmul.f32 %v333, %v401
    %v406 = vtanh.pop %v402
    %v407 = vtanh.pop %v403
    %v408 = vtanh.pop %v404
    %v409 = vtanh.pop %v405
    %v410 = vld [vmem:[%s4] sm:$0xff]
    %v411 = vld [vmem:[%s4 + $0x8] sm:$0xff]
    %v412 = vld [vmem:[%s4 + $0x10] sm:$0xff]
    %v413 = vld [vmem:[%s4 + $0x18] sm:$0xff]
    %v414 = vld [vmem:[%s5] sm:$0xff]
    %v415 = vld [vmem:[%s5 + $0x8] sm:$0xff]
    %v416 = vld [vmem:[%s5 + $0x10] sm:$0xff]
    %v417 = vld [vmem:[%s5 + $0x18] sm:$0xff]
    %v418 = vld [vmem:[%s5 + $0x20] sm:$0xff]
    %v419 = vld [vmem:[%s5 + $0x28] sm:$0xff]
    %v420 = vld [vmem:[%s5 + $0x30] sm:$0xff]
    %v421 = vld [vmem:[%s5 + $0x38] sm:$0xff]
    %v422 = vld [vmem:[%s6] sm:$0xff]
    %v423 = vld [vmem:[%s6 + $0x8] sm:$0xff]
    %v424 = vld [vmem:[%s6 + $0x10] sm:$0xff]
    %v425 = vld [vmem:[%s6 + $0x18] sm:$0xff]
    %427 = vset.pattern.permute.xlu0 0
    %428 = vperm.xlu0 %427, %v422
    %v429 = vpop.permute.xlu0 %428
    %432 = vset.pattern.permute.xlu0 0
    %433 = vperm.xlu0 %432, %v423
    %v434 = vpop.permute.xlu0 %433
    %437 = vset.pattern.permute.xlu0 0
    %438 = vperm.xlu0 %437, %v424
    %v439 = vpop.permute.xlu0 %438
    %442 = vset.pattern.permute.xlu0 0
    %443 = vperm.xlu0 %442, %v425
    %v444 = vpop.permute.xlu0 %443
    %v447 = vsel %vm216, %v410, 0
    %v450 = vsel %vm216, %v411, 0
    %v453 = vsel %vm216, %v412, 0
    %v456 = vsel %vm216, %v413, 0
    %458 = vmatpush.msra.mxu0 0.0
    %459 = vmatpush.msra.mxu0 0.0
    %460 = vmatpush.msra.mxu0 0.0
    %461 = vmatpush.msra.mxu0 0.0
    %462 = vmatpush.msra.mxu0 0.0
    %463 = vmatpush.msra.mxu0 0.0
    %464 = vmatpush.msra.mxu0 0.0
    %465 = vmatpush.msra.mxu0 0.0
    %466 = vmatpush.msra.mxu0 0.0
    %467 = vmatpush.msra.mxu0 0.0
    %468 = vmatpush.msra.mxu0 0.0
    %469 = vmatpush.msra.mxu0 0.0
    %470 = vmatpush.msra.mxu0 %v409
    %471 = vmatpush.msra.mxu0 %v408
    %472 = vmatpush.msra.mxu0 %v407
    %473 = vmatpush.msra.mxu0 %v406
    %474 = vmatmul.f32.gmra.mxu0 %v447
    %v475 = vpop.f32.mrf.mxu0
    %v476 = vadd.f32 %v429, %v475
    %477 = vmatmul.f32.gmra.mxu0 %v450
    %v478 = vpop.f32.mrf.mxu0
    %v479 = vadd.f32 %v434, %v478
    %480 = vmatmul.f32.gmra.mxu0 %v453
    %v481 = vpop.f32.mrf.mxu0
    %v482 = vadd.f32 %v439, %v481
    %483 = vmatmul.f32.gmra.mxu0 %v456
    %v484 = vpop.f32.mrf.mxu0
    %v485 = vadd.f32 %v444, %v484
    %486 = vdwg.mxu0
    %v487 = vsel %vm113, %v476, 0.0
    %v488 = vsel %vm113, %v479, 0.0
    %v489 = vadd.f32 %v487, %v488
    %v490 = vsel %vm113, %v482, 0.0
    %v491 = vadd.f32 %v489, %v490
    %v492 = vsel %vm113, %v485, 0.0
    %v493 = vadd.f32 %v491, %v492
    %v494 = vrot.slane %v493, 4
    %v495 = vadd.f32 %v493, %v494
    %v496 = vrot.slane %v495, 2
    %v497 = vadd.f32 %v495, %v496
    %v498 = vrot.slane %v497, 1
    %v499 = vadd.f32 %v497, %v498
    %v500 = vmul.f32 %v499, %v133
    %v501 = vsub.f32 %v476, %v500
    %v502 = vsub.f32 %v479, %v500
    %v503 = vsub.f32 %v482, %v500
    %v504 = vsub.f32 %v485, %v500
    %v505 = vmul.f32 %v501, %v501
    %v506 = vmul.f32 %v502, %v502
    %v507 = vmul.f32 %v503, %v503
    %v508 = vmul.f32 %v504, %v504
    %v509 = vsel %vm113, %v505, 0.0
    %v510 = vsel %vm113, %v506, 0.0
    %v511 = vadd.f32 %v509, %v510
    %v512 = vsel %vm113, %v507, 0.0
    %v513 = vadd.f32 %v511, %v512
    %v514 = vsel %vm113, %v508, 0.0
    %v515 = vadd.f32 %v513, %v514
    %v516 = vrot.slane %v515, 4
    %v517 = vadd.f32 %v515, %v516
    %v518 = vrot.slane %v517, 2
    %v519 = vadd.f32 %v517, %v518
    %v520 = vrot.slane %v519, 1
    %v521 = vadd.f32 %v519, %v520
    %v522 = vmul.f32 %v521, %v133
    %v523 = vadd.f32 %v522, 1e-05
    %v524 = vrsqrt.pop %v523
    %v525 = vmul.f32 %v524, %v523
    %v526 = vmul.f32 %v525, %v524
    %v527 = vmul.f32 0.5, %v526
    %v528 = vsub.f32 1.5, %v527
    %v529 = vmul.f32 %v524, %v528
    %vm530 = vweird.f32 %v523
    %vm531 = vweird.f32 %v524
    %vm532 = vmor %vm530, %vm531
    %v533 = vsel %vm532, %v524, %v529
    %v534 = vmul.f32 %v501, %v533
    %v535 = vmul.f32 %v502, %v533
    %v536 = vmul.f32 %v503, %v533
    %v537 = vmul.f32 %v504, %v533
    %538 = vset.pattern.permute.xlu0 1
    %539 = vperm.xlu0 %538, %v422
    %v540 = vpop.permute.xlu0 %539
    %542 = vset.pattern.permute.xlu0 1
    %543 = vperm.xlu0 %542, %v423
    %v544 = vpop.permute.xlu0 %543
    %546 = vset.pattern.permute.xlu0 1
    %547 = vperm.xlu0 %546, %v424
    %v548 = vpop.permute.xlu0 %547
    %550 = vset.pattern.permute.xlu0 1
    %551 = vperm.xlu0 %550, %v425
    %v552 = vpop.permute.xlu0 %551
    %v554 = vmul.f32 %v534, %v540
    %v555 = vmul.f32 %v535, %v544
    %v556 = vmul.f32 %v536, %v548
    %v557 = vmul.f32 %v537, %v552
    %558 = vset.pattern.permute.xlu0 2
    %559 = vperm.xlu0 %558, %v422
    %v560 = vpop.permute.xlu0 %559
    %562 = vset.pattern.permute.xlu0 2
    %563 = vperm.xlu0 %562, %v423
    %v564 = vpop.permute.xlu0 %563
    %566 = vset.pattern.permute.xlu0 2
    %567 = vperm.xlu0 %566, %v424
    %v568 = vpop.permute.xlu0 %567
    %570 = vset.pattern.permute.xlu0 2
    %571 = vperm.xlu0 %570, %v425
    %v572 = vpop.permute.xlu0 %571
    %v574 = vadd.f32 %v554, %v560
    %v575 = vadd.f32 %v555, %v564
    %v576 = vadd.f32 %v556, %v568
    %v577 = vadd.f32 %v557, %v572
    %v578 = vmax.f32 %v574, 0.0
    %v579 = vmax.f32 %v575, 0.0
    %v580 = vmax.f32 %v576, 0.0
    %v581 = vmax.f32 %v577, 0.0
    %v583 = vsel %vm216, %v414, 0
    %v586 = vsel %vm216, %v415, 0
    %v589 = vsel %vm216, %v416, 0
    %v592 = vsel %vm216, %v417, 0
    %v595 = vsel %vm216, %v418, 0
    %v598 = vsel %vm216, %v419, 0
    %v601 = vsel %vm216, %v420, 0
    %v604 = vsel %vm216, %v421, 0
    %606 = vmatpush.msra.mxu0 0.0
    %607 = vmatpush.msra.mxu0 0.0
    %608 = vmatpush.msra.mxu0 0.0
    %609 = vmatpush.msra.mxu0 0.0
    %610 = vmatpush.msra.mxu0 0.0
    %611 = vmatpush.msra.mxu0 0.0
    %612 = vmatpush.msra.mxu0 0.0
    %613 = vmatpush.msra.mxu0 0.0
    %614 = vmatpush.msra.mxu0 0.0
    %615 = vmatpush.msra.mxu0 0.0
    %616 = vmatpush.msra.mxu0 0.0
    %617 = vmatpush.msra.mxu0 0.0
    %618 = vmatpush.msra.mxu0 %v581
    %619 = vmatpush.msra.mxu0 %v580
    %620 = vmatpush.msra.mxu0 %v579
    %621 = vmatpush.msra.mxu0 %v578
    %622 = vmatmul.f32.gmra.mxu0 %v583
    %v623 = vpop.f32.mrf.mxu0
    %v624 = vadd.f32 0.0, %v623
    %625 = vmatmul.f32.gmra.mxu0 %v586
    %v626 = vpop.f32.mrf.mxu0
    %v627 = vadd.f32 0.0, %v626
    %628 = vmatmul.f32.gmra.mxu0 %v589
    %v629 = vpop.f32.mrf.mxu0
    %v630 = vadd.f32 0.0, %v629
    %631 = vmatmul.f32.gmra.mxu0 %v592
    %v632 = vpop.f32.mrf.mxu0
    %v633 = vadd.f32 0.0, %v632
    %634 = vmatmul.f32.gmra.mxu0 %v595
    %v635 = vpop.f32.mrf.mxu0
    %v636 = vadd.f32 0.0, %v635
    %637 = vmatmul.f32.gmra.mxu0 %v598
    %v638 = vpop.f32.mrf.mxu0
    %v639 = vadd.f32 0.0, %v638
    %640 = vmatmul.f32.gmra.mxu0 %v601
    %v641 = vpop.f32.mrf.mxu0
    %v642 = vadd.f32 0.0, %v641
    %643 = vmatmul.f32.gmra.mxu0 %v604
    %v644 = vpop.f32.mrf.mxu0
    %v645 = vadd.f32 0.0, %v644
    %646 = vdwg.mxu0
    %647 = vset.pattern.permute.xlu0 3
    %648 = vperm.xlu0 %647, %v422
    %v649 = vpop.permute.xlu0 %648
    %651 = vset.pattern.permute.xlu0 3
    %652 = vperm.xlu0 %651, %v423
    %v653 = vpop.permute.xlu0 %652
    %655 = vset.pattern.permute.xlu0 3
    %656 = vperm.xlu0 %655, %v424
    %v657 = vpop.permute.xlu0 %656
    %659 = vset.pattern.permute.xlu0 3
    %660 = vperm.xlu0 %659, %v425
    %v661 = vpop.permute.xlu0 %660
    %v663 = vadd.f32 %v624, %v649
    %v664 = vadd.f32 %v627, %v653
    %v665 = vadd.f32 %v630, %v657
    %v666 = vadd.f32 %v633, %v661
    %v667 = vtanh.pop %v663
    %v668 = vtanh.pop %v664
    %v669 = vtanh.pop %v665
    %v670 = vtanh.pop %v666
    %671 = vset.pattern.permute.xlu0 4
    %672 = vperm.xlu0 %671, %v422
    %v673 = vpop.permute.xlu0 %672
    %675 = vset.pattern.permute.xlu0 4
    %676 = vperm.xlu0 %675, %v423
    %v677 = vpop.permute.xlu0 %676
    %679 = vset.pattern.permute.xlu0 4
    %680 = vperm.xlu0 %679, %v424
    %v681 = vpop.permute.xlu0 %680
    %683 = vset.pattern.permute.xlu0 4
    %684 = vperm.xlu0 %683, %v425
    %v685 = vpop.permute.xlu0 %684
    %v687 = vadd.f32 %v636, %v673
    %v688 = vadd.f32 %v639, %v677
    %v689 = vadd.f32 %v642, %v681
    %v690 = vadd.f32 %v645, %v685
    %v691 = vmax.f32 %v687, 0.0
    %v692 = vmax.f32 %v688, 0.0
    %v693 = vmax.f32 %v689, 0.0
    %v694 = vmax.f32 %v690, 0.0
    %v695 = vadd.f32 %v667, 0.1
    %v696 = vadd.f32 %v668, 0.1
    %v697 = vadd.f32 %v669, 0.1
    %v698 = vadd.f32 %v670, 0.1
    %v699 = vadd.f32 %v691, 0.1
    %v700 = vadd.f32 %v692, 0.1
    %v701 = vadd.f32 %v693, 0.1
    %v702 = vadd.f32 %v694, 0.1
    %v703 = vadd.f32 %v699, 1e-06
    %v704 = vadd.f32 %v700, 1e-06
    %v705 = vadd.f32 %v701, 1e-06
    %v706 = vadd.f32 %v702, 1e-06
    %v707 = vmax.f32 %v703, 1e-05
    %v708 = vmax.f32 %v704, 1e-05
    %v709 = vmax.f32 %v705, 1e-05
    %v710 = vmax.f32 %v706, 1e-05
    %v711 = vrcp.pop %v707
    %v712 = vmul.f32 %v707, %v711
    %v713 = vsub.f32 1.0, %v712
    %v714 = vmul.f32 %v711, %v713
    %v715 = vadd.f32 %v711, %v714
    %vm716 = vweird.f32 %v707
    %vm717 = vweird.f32 %v711
    %vm718 = vmor %vm716, %vm717
    %v719 = vsel %vm718, %v711, %v715
    %v720 = vand.u32 2147483647, %v707
    %vm721 = vcmp.eq.f32.partialorder %v720, 8.507059e+37
    %v722 = vand.u32 %v707, 2147483648
    %v723 = vor.u32 1.1754944e-38, %v722
    %v724 = vsel %vm721, %v723, %v719
    %v725 = vrcp.pop %v708
    %v726 = vmul.f32 %v708, %v725
    %v727 = vsub.f32 1.0, %v726
    %v728 = vmul.f32 %v725, %v727
    %v729 = vadd.f32 %v725, %v728
    %vm730 = vweird.f32 %v708
    %vm731 = vweird.f32 %v725
    %vm732 = vmor %vm730, %vm731
    %v733 = vsel %vm732, %v725, %v729
    %v734 = vand.u32 2147483647, %v708
    %vm735 = vcmp.eq.f32.partialorder %v734, 8.507059e+37
    %v736 = vand.u32 %v708, 2147483648
    %v737 = vor.u32 1.1754944e-38, %v736
    %v738 = vsel %vm735, %v737, %v733
    %v739 = vrcp.pop %v709
    %v740 = vmul.f32 %v709, %v739
    %v741 = vsub.f32 1.0, %v740
    %v742 = vmul.f32 %v739, %v741
    %v743 = vadd.f32 %v739, %v742
    %vm744 = vweird.f32 %v709
    %vm745 = vweird.f32 %v739
    %vm746 = vmor %vm744, %vm745
    %v747 = vsel %vm746, %v739, %v743
    %v748 = vand.u32 2147483647, %v709
    %vm749 = vcmp.eq.f32.partialorder %v748, 8.507059e+37
    %v750 = vand.u32 %v709, 2147483648
    %v751 = vor.u32 1.1754944e-38, %v750
    %v752 = vsel %vm749, %v751, %v747
    %v753 = vrcp.pop %v710
    %v754 = vmul.f32 %v710, %v753
    %v755 = vsub.f32 1.0, %v754
    %v756 = vmul.f32 %v753, %v755
    %v757 = vadd.f32 %v753, %v756
    %vm758 = vweird.f32 %v710
    %vm759 = vweird.f32 %v753
    %vm760 = vmor %vm758, %vm759
    %v761 = vsel %vm760, %v753, %v757
    %v762 = vand.u32 2147483647, %v710
    %vm763 = vcmp.eq.f32.partialorder %v762, 8.507059e+37
    %v764 = vand.u32 %v710, 2147483648
    %v765 = vor.u32 1.1754944e-38, %v764
    %v766 = vsel %vm763, %v765, %v761
    %v767 = vmul.f32 %v695, %v724
    %v768 = vmul.f32 %v696, %v738
    %v769 = vmul.f32 %v697, %v752
    %v770 = vmul.f32 %v698, %v766
    %v771 = vtanh.pop %v767
    %v772 = vtanh.pop %v768
    %v773 = vtanh.pop %v769
    %v774 = vtanh.pop %v770
    %v775 = vld [vmem:[%s7] sm:$0xff]
    %v776 = vld [vmem:[%s8] sm:$0xff]
    %778 = vset.pattern.permute.xlu0 0
    %779 = vperm.xlu0 %778, %v776
    %v780 = vpop.permute.xlu0 %779
    %v783 = vsel %vm216, %v775, 0
    %785 = vmatpush.msra.mxu0 0.0
    %786 = vmatpush.msra.mxu0 0.0
    %787 = vmatpush.msra.mxu0 0.0
    %788 = vmatpush.msra.mxu0 0.0
    %789 = vmatpush.msra.mxu0 0.0
    %790 = vmatpush.msra.mxu0 0.0
    %791 = vmatpush.msra.mxu0 0.0
    %792 = vmatpush.msra.mxu0 0.0
    %793 = vmatpush.msra.mxu0 0.0
    %794 = vmatpush.msra.mxu0 0.0
    %795 = vmatpush.msra.mxu0 0.0
    %796 = vmatpush.msra.mxu0 0.0
    %797 = vmatpush.msra.mxu0 %v774
    %798 = vmatpush.msra.mxu0 %v773
    %799 = vmatpush.msra.mxu0 %v772
    %800 = vmatpush.msra.mxu0 %v771
    %801 = vmatmul.f32.gmra.mxu0 %v783
    %v802 = vpop.f32.mrf.mxu0
    %v803 = vadd.f32 %v780, %v802
    %804 = vdwg.mxu0
    %805 = vst.msk [vmem:[#allocation2] sm:$0xff] %vm113, %v803
    // Predicated region
    $region38: #{tpu_custom_call.1} parent=1 // pred_check
      _
    $region39: #{tpu_custom_call.1} parent=1 // pred_check_branch
      %807 = sbr.rel (0) target = $region41
    $region40: #{tpu_custom_call.1} parent=1 // pred_region
      %809 = vsyncadd [#allocation3], 0
      %s811 = sshll.u32 [#allocation2], 4
      %s812 = int_to_ptr.vmem [resolvable:$true] %s811
      %s813 = sshll.u32 %s9, 4
      %s814 = int_to_ptr.hbm [resolvable:$true] %s813
      %816 = dma.vmem_to_hbm [thread:$0]  %s812, 128, %s814, [#allocation3]
    $region41: #{tpu_custom_call.1} parent=1 // pred_fallthru
      _
    // Predicated region
    $region42: #{tpu_custom_call.1} parent=1 // pred_check
      _
    $region43: #{tpu_custom_call.1} parent=1 // pred_check_branch
      %818 = sbr.rel (0) target = $region45
    $region44: #{tpu_custom_call.1} parent=1 // pred_region
      %820 = dma.done [#allocation3], 128
    $region45: #{tpu_custom_call.1} parent=1 // pred_fallthru
      _
    %821 = vsyncpa [#allocation3], 1

</llo_original>
